<compile_context>
chip_gen: v5e
topology: v5e:2x2
jax: 0.10.0
libtpu: 0.0.40
codegen_flags: <defaults>
</compile_context>

<pallas_src>
import functools

import jax
import jax.numpy as jnp
import numpy as np
from jax import lax
from jax.experimental import pallas as pl
from jax.experimental.pallas import tpu as pltpu

LEAKY_SLOPE = 0.01  # torch.nn.LeakyReLU default negative_slope


def _leaky_relu(x):
    return jnp.where(x > 0, x, LEAKY_SLOPE * x)


def _round_up(x, m):
    return ((x + m - 1) // m) * m


def bilinear_aligner_kernel(
    mixw_ref,      # SMEM (1, L)            gamma * softmax(scalar_params), f32
    layers_ref,    # VMEM (1, L, TILE, Dp)  stacked decoder hidden states tile, bf16
    wcat_ref,      # VMEM (Dp, 2*Hp)        [w_src | w_tgt], bf16, resident
    bcat_ref,      # VMEM (1, 2*Hp)         [b_src | b_tgt], f32,  resident
    wbil_ref,      # VMEM (Hp, Hp)          bilinear weight, bf16, resident
    out_ref,       # VMEM (1, Sp, Sp)       aligned scores for this batch element, f32
    m1_all_ref,    # VMEM scratch (Sp, Hp)  h1 @ W_bil, bf16 (persists across tiles)
    h2_all_ref,    # VMEM scratch (Sp, Hp)  h2, bf16 (persists across tiles)
    *, num_layers, num_tiles, tile, hidden_pad, offset,
):
    j = pl.program_id(1)

    # --- ScalarMix: weighted sum of the last `bart_layers` layers (f32 VPU) ---
    mixed = mixw_ref[0, 0] * layers_ref[0, 0].astype(jnp.float32)
    for l in range(1, num_layers):
        mixed = mixed + mixw_ref[0, l] * layers_ref[0, l].astype(jnp.float32)
    mixed = mixed.astype(jnp.bfloat16)                            # (TILE, Dp)

    # --- fused src/tgt projection: one wide bf16 MXU matmul, f32 accumulate ---
    hcat = jnp.dot(mixed, wcat_ref[...], preferred_element_type=jnp.float32)
    hcat = _leaky_relu(hcat + bcat_ref[...])                      # (TILE, 2*Hp) f32
    h1 = hcat[:, :hidden_pad].astype(jnp.bfloat16)                # (TILE, Hp)
    h2 = hcat[:, hidden_pad:].astype(jnp.bfloat16)                # (TILE, Hp)

    # --- m1[a, y] = sum_x h1[a, x] W[x, y]; stash this tile's rows in scratch ---
    m1 = jnp.dot(h1, wbil_ref[...], preferred_element_type=jnp.float32)
    row0 = pl.multiple_of(j * tile, tile)
    m1_all_ref[pl.ds(row0, tile), :] = m1.astype(jnp.bfloat16)
    h2_all_ref[pl.ds(row0, tile), :] = h2

    # --- last tile: full bilinear + causal mask, single lane-dense store ---
    @pl.when(j == num_tiles - 1)
    def _():
        # aligned[b, a] = sum_y h2[b, y] * m1[a, y] -- NT contraction on the MXU,
        # no (S, H) transpose through the XLU.
        aligned = lax.dot_general(
            h2_all_ref[...], m1_all_ref[...],
            dimension_numbers=(((1,), (1,)), ((), ())),
            preferred_element_type=jnp.float32)                   # (Sp, Sp), [b, a]

        # causal mask: tril(offset) -> keep a <= b + offset, else -inf.
        # Computed only once per batch element (runs at the final tile only).
        s = aligned.shape[0]
        b_idx = lax.broadcasted_iota(jnp.int32, (s, s), 0)
        a_idx = lax.broadcasted_iota(jnp.int32, (s, s), 1)
        keep = (a_idx - b_idx) <= offset
        # NOTE: -inf is reference-faithful; downstream consumers multiplying
        # masked entries by 0 would see NaNs (see review) -- kept as-is.
        out_ref[0] = jnp.where(keep, aligned, -jnp.inf)


def bilinear_aligner(decoder_hidden_states, params, *, bart_layers, offset,
                     tile_s=None):
    """Pallas implementation of BilinearAligner.forward (training path).

    decoder_hidden_states: list of (B, S, D_in) float32 arrays (all decoder layers).
    """
    layers = jnp.stack(decoder_hidden_states[-bart_layers:], axis=1)  # (B, L, S, D_in)
    B, L, S, D_in = layers.shape
    H = params["w_src"].shape[1]

    # Lane-aligned padded sizes (no-ops at realistic BART shapes).
    D_pad = _round_up(D_in, 128)
    H_pad = _round_up(H, 128)
    tile = tile_s if tile_s is not None else min(256, _round_up(S, 128))
    S_pad = _round_up(S, tile)
    S_pad = _round_up(S_pad, 128)      # lane-dense output stores
    num_tiles = S_pad // tile

    # ScalarMix glue: gamma * softmax(scalar_params), shaped (1, L) for SMEM.
    mixw = (params["gamma"] * jax.nn.softmax(params["scalar_params"]))[None, :]
    mixw = mixw.astype(jnp.float32)

    # bf16 activations for HBM traffic + MXU throughput; f32 accumulation in-kernel.
    layers_p = jnp.pad(
        layers, ((0, 0), (0, 0), (0, S_pad - S), (0, D_pad - D_in))
    ).astype(jnp.bfloat16)

    def pad2(w, rows, cols):
        return jnp.pad(w, ((0, rows - w.shape[0]), (0, cols - w.shape[1])))

    w_cat = jnp.concatenate(
        [pad2(params["w_src"], D_pad, H_pad), pad2(params["w_tgt"], D_pad, H_pad)],
        axis=1).astype(jnp.bfloat16)                               # (Dp, 2*Hp)
    b_cat = jnp.concatenate(
        [pad2(params["b_src"], 1, H_pad), pad2(params["b_tgt"], 1, H_pad)],
        axis=1).astype(jnp.float32)                                # (1, 2*Hp)
    w_bil = pad2(params["bilinear_weight"], H_pad, H_pad).astype(jnp.bfloat16)

    # VMEM budget: double-buffered pipelined blocks + resident weights + scratch
    # + headroom for in-kernel f32 temporaries.
    vmem_bytes = (
        2 * (L * tile * D_pad * 2)                       # layers tile, bf16, 2 bufs
        + 2 * (S_pad * S_pad * 4)                        # output block, f32, 2 bufs
        + (D_pad * 2 * H_pad + H_pad * H_pad) * 2        # resident bf16 weights
        + 2 * H_pad * 4                                  # resident f32 bias
        + 2 * (S_pad * H_pad * 2)                        # m1_all / h2_all scratch
        + 2 * (S_pad * S_pad * 4)                        # f32 temporaries headroom
    )
    vmem_limit = min(64 * 1024 * 1024, max(32 * 1024 * 1024, int(1.5 * vmem_bytes)))

    kernel = functools.partial(
        bilinear_aligner_kernel,
        num_layers=L, num_tiles=num_tiles, tile=tile,
        hidden_pad=H_pad, offset=offset,
    )

    out = pl.pallas_call(
        kernel,
        out_shape=jax.ShapeDtypeStruct((B, S_pad, S_pad), jnp.float32),
        grid=(B, num_tiles),
        in_specs=[
            pl.BlockSpec(memory_space=pltpu.MemorySpace.SMEM),             # mix weights
            pl.BlockSpec((1, L, tile, D_pad), lambda b, j: (b, 0, j, 0)),  # layers tile
            pl.BlockSpec(memory_space=pltpu.MemorySpace.VMEM),             # w_cat (resident, 1 copy)
            pl.BlockSpec(memory_space=pltpu.MemorySpace.VMEM),             # b_cat (resident, 1 copy)
            pl.BlockSpec(memory_space=pltpu.MemorySpace.VMEM),             # w_bil (resident, 1 copy)
        ],
        out_specs=pl.BlockSpec((1, S_pad, S_pad), lambda b, j: (b, 0, 0)),
        scratch_shapes=[
            pltpu.VMEM((S_pad, H_pad), jnp.bfloat16),   # m1_all = h1 @ W_bil
            pltpu.VMEM((S_pad, H_pad), jnp.bfloat16),   # h2_all
        ],
        compiler_params=pltpu.CompilerParams(
            dimension_semantics=("parallel", "arbitrary"),
            vmem_limit_bytes=vmem_limit,
        ),
    )(mixw, layers_p, w_cat, b_cat, w_bil)

    return out[:, :S, :S]


def _reference(decoder_hidden_states, params, *, bart_layers, offset):
    """Pure-JAX f32 reference mirroring the PyTorch forward (is_generating=False)."""
    layers = jnp.stack(decoder_hidden_states[-bart_layers:], axis=0)  # (L, B, S, D)
    mixw = params["gamma"] * jax.nn.softmax(params["scalar_params"])
    mixed = jnp.einsum("l,lbsd->bsd", mixw, layers)
    h1 = _leaky_relu(mixed @ params["w_src"] + params["b_src"])
    h2 = _leaky_relu(mixed @ params["w_tgt"] + params["b_tgt"])
    aligned = jnp.einsum("qax,xy,qby->qba", h1, params["bilinear_weight"], h2)
    S = aligned.shape[1]
    b_idx = lax.broadcasted_iota(jnp.int32, (S, S), 0)
    a_idx = lax.broadcasted_iota(jnp.int32, (S, S), 1)
    keep = (a_idx <= b_idx + offset)[None]
    return jnp.where(keep, aligned, -jnp.inf)


if __name__ == "__main__":
    # Small shapes consistent with the module's forward.
    B, S, D_in, H, L = 2, 16, 32, 32, 3          # batch, seq, input_size, hidden_size, bart_layers
    OFFSET = -1                                   # var_format != 'target-side-pointer2'

    key = jax.random.PRNGKey(0)
    ks = jax.random.split(key, 8)

    # Simulate decoder_hidden_states: (L + 1) layers of shape (B, S, D_in).
    decoder_hidden_states = [
        jax.random.normal(ks[i], (B, S, D_in), jnp.float32) for i in range(L + 1)
    ]

    # Deterministic synthetic parameters (shapes from __init__, deeper=False).
    # NOTE: the module inits bilinear_weight to zeros; we use small random
    # values so the kernel output is non-trivial for validation.
    params = {
        "scalar_params": jnp.zeros((L,), jnp.float32),  # ScalarMix scalars (init 0)
        "gamma": jnp.float32(1.0),                      # ScalarMix gamma (init 1)
        "w_src": 0.05 * jax.random.normal(ks[4], (D_in, H), jnp.float32),
        "b_src": 0.05 * jax.random.normal(ks[7], (1, H), jnp.float32),
        "w_tgt": 0.05 * jax.random.normal(ks[5], (D_in, H), jnp.float32),
        "b_tgt": 0.05 * jax.random.normal(ks[3], (1, H), jnp.float32),
        "bilinear_weight": 0.05 * jax.random.normal(ks[6], (H, H), jnp.float32),
    }

    out = bilinear_aligner(
        decoder_hidden_states, params, bart_layers=L, offset=OFFSET
    )
    out = jax.block_until_ready(out)

    ref = _reference(decoder_hidden_states, params, bart_layers=L, offset=OFFSET)
    # bf16 matmul operands with f32 accumulation => loosened tolerance vs f32 ref.
    np.testing.assert_allclose(np.asarray(out), np.asarray(ref), rtol=5e-2, atol=5e-3)

    print("KERNEL_OK")
</pallas_src>

<mosaic_0001>
module attributes {stable_mosaic.version = 11 : i64} {
  func.func @bilinear_aligner_kernel(%arg0: i32, %arg1: i32, %arg2: memref<1x3xf32, #tpu.memory_space<smem>>, %arg3: memref<1x3x128x128xbf16, #tpu.memory_space<vmem>>, %arg4: memref<128x256xbf16, #tpu.memory_space<vmem>>, %arg5: memref<1x256xf32, #tpu.memory_space<vmem>>, %arg6: memref<128x128xbf16, #tpu.memory_space<vmem>>, %arg7: memref<1x128x128xf32, #tpu.memory_space<vmem>>, %arg8: memref<128x128xbf16, #tpu.memory_space<vmem>>, %arg9: memref<128x128xbf16, #tpu.memory_space<vmem>>) attributes {dimension_semantics = [#tpu.dimension_semantics<parallel>, #tpu.dimension_semantics<arbitrary>], iteration_bounds = array<i64: 2, 1>, scalar_prefetch = 0 : i64, scratch_operands = 2 : i64, tpu.core_type = #tpu.core_type<tc>, window_params = [{transform_indices = @transform_0, window_bounds = array<i64: 1, 3>}, {transform_indices = @transform_1, window_bounds = array<i64: 1, 3, 128, 128>}, {pipeline_mode = #tpu.pipeline_mode<synchronous>, transform_indices = @transform_2, window_bounds = array<i64: 128, 256>}, {pipeline_mode = #tpu.pipeline_mode<synchronous>, transform_indices = @transform_3, window_bounds = array<i64: 1, 256>}, {pipeline_mode = #tpu.pipeline_mode<synchronous>, transform_indices = @transform_4, window_bounds = array<i64: 128, 128>}, {transform_indices = @transform_5, window_bounds = array<i64: 1, 128, 128>}]} {
    %c0 = arith.constant 0 : index
    %c0_0 = arith.constant 0 : index
    %0 = memref.load %arg2[%c0, %c0_0] : memref<1x3xf32, #tpu.memory_space<smem>>
    %c0_1 = arith.constant 0 : index
    %c0_2 = arith.constant 0 : index
    %c0_3 = arith.constant 0 : index
    %c0_4 = arith.constant 0 : index
    %1 = vector.load %arg3[%c0_1, %c0_2, %c0_3, %c0_4] : memref<1x3x128x128xbf16, #tpu.memory_space<vmem>>, vector<1x1x128x128xbf16>
    %2 = vector.shape_cast %1 : vector<1x1x128x128xbf16> to vector<128x128xbf16>
    %3 = arith.extf %2 : vector<128x128xbf16> to vector<128x128xf32>
    %4 = vector.broadcast %0 : f32 to vector<128x128xf32>
    %5 = arith.mulf %4, %3 : vector<128x128xf32>
    %c0_5 = arith.constant 0 : index
    %c1 = arith.constant 1 : index
    %6 = memref.load %arg2[%c0_5, %c1] : memref<1x3xf32, #tpu.memory_space<smem>>
    %c0_6 = arith.constant 0 : index
    %c1_7 = arith.constant 1 : index
    %c0_8 = arith.constant 0 : index
    %c0_9 = arith.constant 0 : index
    %7 = vector.load %arg3[%c0_6, %c1_7, %c0_8, %c0_9] : memref<1x3x128x128xbf16, #tpu.memory_space<vmem>>, vector<1x1x128x128xbf16>
    %8 = vector.shape_cast %7 : vector<1x1x128x128xbf16> to vector<128x128xbf16>
    %9 = arith.extf %8 : vector<128x128xbf16> to vector<128x128xf32>
    %10 = vector.broadcast %6 : f32 to vector<128x128xf32>
    %11 = arith.mulf %10, %9 : vector<128x128xf32>
    %12 = arith.addf %5, %11 : vector<128x128xf32>
    %c0_10 = arith.constant 0 : index
    %c2 = arith.constant 2 : index
    %13 = memref.load %arg2[%c0_10, %c2] : memref<1x3xf32, #tpu.memory_space<smem>>
    %c0_11 = arith.constant 0 : index
    %c2_12 = arith.constant 2 : index
    %c0_13 = arith.constant 0 : index
    %c0_14 = arith.constant 0 : index
    %14 = vector.load %arg3[%c0_11, %c2_12, %c0_13, %c0_14] : memref<1x3x128x128xbf16, #tpu.memory_space<vmem>>, vector<1x1x128x128xbf16>
    %15 = vector.shape_cast %14 : vector<1x1x128x128xbf16> to vector<128x128xbf16>
    %16 = arith.extf %15 : vector<128x128xbf16> to vector<128x128xf32>
    %17 = vector.broadcast %13 : f32 to vector<128x128xf32>
    %18 = arith.mulf %17, %16 : vector<128x128xf32>
    %19 = arith.addf %12, %18 : vector<128x128xf32>
    %20 = arith.truncf %19 : vector<128x128xf32> to vector<128x128xbf16>
    %c0_15 = arith.constant 0 : index
    %c0_16 = arith.constant 0 : index
    %21 = vector.load %arg4[%c0_15, %c0_16] : memref<128x256xbf16, #tpu.memory_space<vmem>>, vector<128x256xbf16>
    %cst = arith.constant dense<0.000000e+00> : vector<128x256xf32>
    %22 = tpu.matmul %20, %21, %cst {dimension_numbers = #tpu.dot_dimension_numbers<[1], [0], [0], [1], [0, 0, 1, 1], [], []>} : vector<128x128xbf16>, vector<128x256xbf16>, vector<128x256xf32> -> vector<128x256xf32>
    %c0_17 = arith.constant 0 : index
    %c0_18 = arith.constant 0 : index
    %23 = vector.load %arg5[%c0_17, %c0_18] : memref<1x256xf32, #tpu.memory_space<vmem>>, vector<1x256xf32>
    %24 = vector.broadcast %23 : vector<1x256xf32> to vector<128x256xf32>
    %25 = arith.addf %22, %24 : vector<128x256xf32>
    %cst_19 = arith.constant 0.000000e+00 : f32
    %26 = vector.broadcast %cst_19 : f32 to vector<128x256xf32>
    %27 = arith.cmpf ogt, %25, %26 : vector<128x256xf32>
    %cst_20 = arith.constant 0.00999999977 : f32
    %28 = vector.broadcast %cst_20 : f32 to vector<128x256xf32>
    %29 = arith.mulf %28, %25 : vector<128x256xf32>
    %30 = arith.select %27, %25, %29 : vector<128x256xi1>, vector<128x256xf32>
    %31 = vector.extract_strided_slice %30 {offsets = [0, 0], sizes = [128, 128], strides = [1, 1]} : vector<128x256xf32> to vector<128x128xf32>
    %32 = arith.truncf %31 : vector<128x128xf32> to vector<128x128xbf16>
    %33 = vector.extract_strided_slice %30 {offsets = [0, 128], sizes = [128, 128], strides = [1, 1]} : vector<128x256xf32> to vector<128x128xf32>
    %34 = arith.truncf %33 : vector<128x128xf32> to vector<128x128xbf16>
    %c0_21 = arith.constant 0 : index
    %c0_22 = arith.constant 0 : index
    %35 = vector.load %arg6[%c0_21, %c0_22] : memref<128x128xbf16, #tpu.memory_space<vmem>>, vector<128x128xbf16>
    %cst_23 = arith.constant dense<0.000000e+00> : vector<128x128xf32>
    %36 = tpu.matmul %32, %35, %cst_23 {dimension_numbers = #tpu.dot_dimension_numbers<[1], [0], [0], [1], [0, 0, 1, 1], [], []>} : vector<128x128xbf16>, vector<128x128xbf16>, vector<128x128xf32> -> vector<128x128xf32>
    %c128_i32 = arith.constant 128 : i32
    %37 = arith.muli %arg1, %c128_i32 : i32
    %38 = tpu.assume_multiple %37, 128 : i32
    %39 = arith.truncf %36 : vector<128x128xf32> to vector<128x128xbf16>
    %40 = arith.index_cast %38 : i32 to index
    %c0_24 = arith.constant 0 : index
    %41 = vector.load %arg8[%40, %c0_24] : memref<128x128xbf16, #tpu.memory_space<vmem>>, vector<128x128xbf16>
    tpu.vector_store %arg8[%40, %c0_24], %39 {strides = array<i32>} : memref<128x128xbf16, #tpu.memory_space<vmem>>, vector<128x128xbf16>,
    %42 = arith.index_cast %38 : i32 to index
    %c0_25 = arith.constant 0 : index
    %43 = vector.load %arg9[%42, %c0_25] : memref<128x128xbf16, #tpu.memory_space<vmem>>, vector<128x128xbf16>
    tpu.vector_store %arg9[%42, %c0_25], %34 {strides = array<i32>} : memref<128x128xbf16, #tpu.memory_space<vmem>>, vector<128x128xbf16>,
    %c0_i32 = arith.constant 0 : i32
    %44 = arith.cmpi eq, %arg1, %c0_i32 : i32
    %45 = arith.extui %44 : i1 to i32
    %c0_i32_26 = arith.constant 0 : i32
    %46 = arith.cmpi ne, %45, %c0_i32_26 : i32
    scf.if %46 {
      %c0_27 = arith.constant 0 : index
      %c0_28 = arith.constant 0 : index
      %47 = vector.load %arg9[%c0_27, %c0_28] : memref<128x128xbf16, #tpu.memory_space<vmem>>, vector<128x128xbf16>
      %c0_29 = arith.constant 0 : index
      %c0_30 = arith.constant 0 : index
      %48 = vector.load %arg8[%c0_29, %c0_30] : memref<128x128xbf16, #tpu.memory_space<vmem>>, vector<128x128xbf16>
      %cst_31 = arith.constant dense<0.000000e+00> : vector<128x128xf32>
      %49 = tpu.matmul %47, %48, %cst_31 {dimension_numbers = #tpu.dot_dimension_numbers<[1], [1], [0], [0], [0, 0, 1, 0], [], []>} : vector<128x128xbf16>, vector<128x128xbf16>, vector<128x128xf32> -> vector<128x128xf32>
      %50 = tpu.iota {dimensions = array<i32: 0>} : vector<128x128xi32>
      %51 = tpu.iota {dimensions = array<i32: 1>} : vector<128x128xi32>
      %52 = arith.subi %51, %50 : vector<128x128xi32>
      %c-1_i32 = arith.constant -1 : i32
      %53 = vector.broadcast %c-1_i32 : i32 to vector<128x128xi32>
      %54 = arith.cmpi sle, %52, %53 : vector<128x128xi32>
      %cst_32 = arith.constant 0xFF800000 : f32
      %55 = vector.broadcast %cst_32 : f32 to vector<128x128xf32>
      %56 = arith.select %54, %49, %55 : vector<128x128xi1>, vector<128x128xf32>
      %c0_33 = arith.constant 0 : index
      %c0_34 = arith.constant 0 : index
      %c0_35 = arith.constant 0 : index
      %57 = vector.load %arg7[%c0_33, %c0_34, %c0_35] : memref<1x128x128xf32, #tpu.memory_space<vmem>>, vector<1x128x128xf32>
      %58 = vector.shape_cast %57 : vector<1x128x128xf32> to vector<128x128xf32>
      %59 = vector.shape_cast %56 : vector<128x128xf32> to vector<1x128x128xf32>
      tpu.vector_store %arg7[%c0_33, %c0_34, %c0_35], %59 {strides = array<i32>} : memref<1x128x128xf32, #tpu.memory_space<vmem>>, vector<1x128x128xf32>,
    } else {
    }
    return
  }
  func.func @transform_0(%arg0: i32, %arg1: i32) -> (i32, i32) {
    %c0_i32 = arith.constant 0 : i32
    %c0_i32_0 = arith.constant 0 : i32
    %c0_i32_1 = arith.constant 0 : i32
    return %c0_i32, %c0_i32_0 : i32, i32
  }
  func.func @transform_1(%arg0: i32, %arg1: i32) -> (i32, i32, i32, i32) {
    %c0_i32 = arith.constant 0 : i32
    %c0_i32_0 = arith.constant 0 : i32
    %c0_i32_1 = arith.constant 0 : i32
    return %arg0, %c0_i32, %arg1, %c0_i32_0 : i32, i32, i32, i32
  }
  func.func @transform_2(%arg0: i32, %arg1: i32) -> (i32, i32) {
    %c0_i32 = arith.constant 0 : i32
    %c0_i32_0 = arith.constant 0 : i32
    %c0_i32_1 = arith.constant 0 : i32
    return %c0_i32, %c0_i32_0 : i32, i32
  }
  func.func @transform_3(%arg0: i32, %arg1: i32) -> (i32, i32) {
    %c0_i32 = arith.constant 0 : i32
    %c0_i32_0 = arith.constant 0 : i32
    %c0_i32_1 = arith.constant 0 : i32
    return %c0_i32, %c0_i32_0 : i32, i32
  }
  func.func @transform_4(%arg0: i32, %arg1: i32) -> (i32, i32) {
    %c0_i32 = arith.constant 0 : i32
    %c0_i32_0 = arith.constant 0 : i32
    %c0_i32_1 = arith.constant 0 : i32
    return %c0_i32, %c0_i32_0 : i32, i32
  }
  func.func @transform_5(%arg0: i32, %arg1: i32) -> (i32, i32, i32) {
    %c0_i32 = arith.constant 0 : i32
    %c0_i32_0 = arith.constant 0 : i32
    %c0_i32_1 = arith.constant 0 : i32
    return %arg0, %c0_i32, %c0_i32_0 : i32, i32, i32
  }
}

</mosaic_0001>

<llo_original>
// kernel: tpu_custom_call.1
$region0: #{tpu_custom_call.1}
  #allocation0 [shape = 'u32[]', space=smem, size = 0x4, offset = 0x4, fixed_abs, tag = 'smem constant byte address 0x4 - core index']
  #allocation1 [shape = 'u32[72,128]{1,0:T(1,128)}', space=vmem, size = 0x9000, scoped, tag = 'internal scratch']
  #allocation2 [shape = 'bf16[128,128]{1,0:T(8,128)(2,1)}', space=vmem, size = 0x8000, scoped, tag = 'scratch operand']
  #allocation3 [shape = 'bf16[128,128]{1,0:T(8,128)(2,1)}', space=vmem, size = 0x8000, scoped, tag = 'scratch operand']
  %s0 = inlined_call_operand.hbm [shape: f32[1,3], index: 0, kind: input, shape index: {}]
  %s1 = inlined_call_operand.hbm [shape: bf16[2,3,128,128], index: 1, kind: input, shape index: {}]
  %s2 = inlined_call_operand.hbm [shape: bf16[128,256], index: 2, kind: input, shape index: {}]
  %s3 = inlined_call_operand.vmem [shape: f32[1,256], index: 3, kind: input, shape index: {}]
  %s4 = inlined_call_operand.hbm [shape: bf16[128,128], index: 4, kind: input, shape index: {}]
  %s5 = inlined_call_operand.hbm [shape: f32[2,128,128], index: 5, kind: output, shape index: {}]
  %s6 = sld [smem:[#allocation0]]
  $region73: #{tpu_custom_call.1} parent=0
    _
  %s8 = ssub.s32 1, %s6
  %s9 = scalar_select 0, %s8, %s6
  $region1: #{tpu_custom_call.1} parent=0
    #allocation4 [shape = 'u8[512]{0}', space=smem, size = 0x200, scoped, tag = 'input window, operand 0, single buffered']
    #allocation5 [shape = 's32[2]{0}', space=sflag, size = 0x8, scoped, tag = 'scoped memory for tpu_custom_call.1']
    #allocation6 [shape = 's32[2]{0}', space=sflag, size = 0x8, scoped, tag = 'scoped memory for tpu_custom_call.1']
    #allocation7 [shape = 's32[2]{0}', space=sflag, size = 0x8, scoped, tag = 'scoped memory for tpu_custom_call.1']
    #allocation8 [shape = 'u8[196608]{0}', space=vmem, size = 0x30000, scoped, tag = 'input window, operand 1']
    #allocation9 [shape = 'u8[65536]{0}', space=vmem, size = 0x10000, scoped, tag = 'input window, operand 2, single buffered']
    #allocation10 [shape = 's32[1]{0}', space=sflag, size = 0x4, scoped, tag = 'scoped memory for tpu_custom_call.1']
    #allocation11 [shape = 'u8[32768]{0}', space=vmem, size = 0x8000, scoped, tag = 'input window, operand 4, single buffered']
    #allocation12 [shape = 'u8[131072]{0}', space=vmem, size = 0x20000, scoped, tag = 'output window, operand 0']
    %10 = vsyncpa [#allocation7], 0
    %11 = vsyncpa [#allocation5], 0
    %s12 = scalar_lea.sflag [#allocation5], 1
    %13 = vsyncpa %s12, 0
    %14 = vsyncpa [#allocation10], 0
    %15 = vsyncpa [#allocation6], 0
    %s16 = scalar_lea.sflag [#allocation6], 1
    %17 = vsyncpa %s16, 0
    loop: start=0, step=1, limit=4
    $region2: #{tpu_custom_call.1} parent=1 // loop_pre_header
      _
    $region3: #{tpu_custom_call.1} parent=1 // loop_header
      %s19 = sphi 0, %s23
      %p20 = scmp.ge.s32.totalorder %s19, 4
      %s26 = sphi 0, %s38
      %s27 = sphi 0, %s34
      %s28 = sphi 0, %s26
      %s29 = sphi 0, %s27
      %s30 = sphi 0, %s28
      %s31 = sphi 0, %s29
      %s39 = sphi 0, %s39
      %s41 = sphi 0, %s39
      %s42 = sphi 0, %s41
      %s56 = sphi 0, %s42
      %s64 = sphi 0, %s66
      %s67 = sphi 0, %s64
      %s68 = sphi 0, %s67
      %s84 = sphi 0, %s68
      %s88 = sphi 0, %s88
      %s90 = sphi 0, %s88
      %s91 = sphi 0, %s90
      %s105 = sphi 0, %s91
      %s109 = sphi 0, %s109
      %s111 = sphi 0, %s109
      %s112 = sphi 0, %s111
      %s126 = sphi 0, %s112
      %s130 = sphi 0, %s130
      %s132 = sphi 0, %s130
      %s133 = sphi 0, %s132
      %s147 = sphi 0, %s133
      %s153 = sphi 0, %s155
      %s156 = sphi 0, %s153
      %s157 = sphi 0, %s156
      %s173 = sphi 0, %s157
    $region4: #{tpu_custom_call.1} parent=1 // loop_header_branch
      %22 = sbr.rel (%p20) target = $region8
    $region5: #{tpu_custom_call.1} parent=1 // loop_body
      %s24 = ssub.s32 %s19, 1
      %s25 = ssub.s32 %s19, 2
      %s32 = sadd.s32 1, %s27
      %p33 = scmp.ge.s32.totalorder %s32, 1
      %s34 = scalar_select %p33, 0, %s32
      %s35 = sadd.s32 1, %s26
      %s36 = scalar_select %p33, %s35, %s26
      %p37 = scmp.ge.s32.totalorder %s36, 2
      %s38 = scalar_select %p37, 0, %s36
      %s40 = sadd.s32 %s39, 1
      %p43 = scmp.eq.s32.totalorder %s19, 1
      %p44 = scmp.ne.s32.totalorder %s39, %s41
      %p45 = scmp.eq.s32.totalorder %s19, 0
      %p46 = por %p44, %p45
      %p47 = scmp.ne.s32.totalorder %s39, %s41
      %p48 = scmp.eq.s32.totalorder %s24, 1
      %p49 = por %p47, %p48
      %p50 = scmp.ne.s32.totalorder %s41, %s42
      %p51 = scmp.eq.s32.totalorder %s24, 0
      %p52 = por %p50, %p51
      %p53 = scmp.ne.s32.totalorder %s41, %s42
      %p54 = scmp.eq.s32.totalorder %s25, 1
      %p55 = por %p53, %p54
      %p57 = scmp.ne.s32.totalorder %s42, %s56
      %p58 = scmp.eq.s32.totalorder %s25, 0
      %p59 = por %p57, %p58
      %s60 = ssub.s32 %s26, %s38
      %s61 = ssub.s32 %s27, %s34
      %s62 = sor.u32 %s60, %s61
      %p63 = scmp.eq.s32.totalorder %s62, 0
      %s65 = sadd.s32 %s64, 1
      %s66 = scalar_select %p63, %s64, %s65
      %p69 = pneg %p63
      %p70 = scmp.eq.s32.totalorder %s19, 1
      %p71 = por %p69, %p70
      %p72 = scmp.ne.s32.totalorder %s64, %s67
      %p73 = scmp.eq.s32.totalorder %s19, 0
      %p74 = por %p72, %p73
      %p75 = scmp.ne.s32.totalorder %s64, %s67
      %p76 = scmp.eq.s32.totalorder %s24, 1
      %p77 = por %p75, %p76
      %p78 = scmp.ne.s32.totalorder %s67, %s68
      %p79 = scmp.eq.s32.totalorder %s24, 0
      %p80 = por %p78, %p79
      %p81 = scmp.ne.s32.totalorder %s67, %s68
      %p82 = scmp.eq.s32.totalorder %s25, 1
      %p83 = por %p81, %p82
      %p85 = scmp.ne.s32.totalorder %s68, %s84
      %p86 = scmp.eq.s32.totalorder %s25, 0
      %p87 = por %p85, %p86
      %s89 = sadd.s32 %s88, 1
      %p92 = scmp.eq.s32.totalorder %s19, 1
      %p93 = scmp.ne.s32.totalorder %s88, %s90
      %p94 = scmp.eq.s32.totalorder %s19, 0
      %p95 = por %p93, %p94
      %p96 = scmp.ne.s32.totalorder %s88, %s90
      %p97 = scmp.eq.s32.totalorder %s24, 1
      %p98 = por %p96, %p97
      %p99 = scmp.ne.s32.totalorder %s90, %s91
      %p100 = scmp.eq.s32.totalorder %s24, 0
      %p101 = por %p99, %p100
      %p102 = scmp.ne.s32.totalorder %s90, %s91
      %p103 = scmp.eq.s32.totalorder %s25, 1
      %p104 = por %p102, %p103
      %p106 = scmp.ne.s32.totalorder %s91, %s105
      %p107 = scmp.eq.s32.totalorder %s25, 0
      %p108 = por %p106, %p107
      %s110 = sadd.s32 %s109, 1
      %p113 = scmp.eq.s32.totalorder %s19, 1
      %p114 = scmp.ne.s32.totalorder %s109, %s111
      %p115 = scmp.eq.s32.totalorder %s19, 0
      %p116 = por %p114, %p115
      %p117 = scmp.ne.s32.totalorder %s109, %s111
      %p118 = scmp.eq.s32.totalorder %s24, 1
      %p119 = por %p117, %p118
      %p120 = scmp.ne.s32.totalorder %s111, %s112
      %p121 = scmp.eq.s32.totalorder %s24, 0
      %p122 = por %p120, %p121
      %p123 = scmp.ne.s32.totalorder %s111, %s112
      %p124 = scmp.eq.s32.totalorder %s25, 1
      %p125 = por %p123, %p124
      %p127 = scmp.ne.s32.totalorder %s112, %s126
      %p128 = scmp.eq.s32.totalorder %s25, 0
      %p129 = por %p127, %p128
      %s131 = sadd.s32 %s130, 1
      %p134 = scmp.eq.s32.totalorder %s19, 1
      %p135 = scmp.ne.s32.totalorder %s130, %s132
      %p136 = scmp.eq.s32.totalorder %s19, 0
      %p137 = por %p135, %p136
      %p138 = scmp.ne.s32.totalorder %s130, %s132
      %p139 = scmp.eq.s32.totalorder %s24, 1
      %p140 = por %p138, %p139
      %p141 = scmp.ne.s32.totalorder %s132, %s133
      %p142 = scmp.eq.s32.totalorder %s24, 0
      %p143 = por %p141, %p142
      %p144 = scmp.ne.s32.totalorder %s132, %s133
      %p145 = scmp.eq.s32.totalorder %s25, 1
      %p146 = por %p144, %p145
      %p148 = scmp.ne.s32.totalorder %s133, %s147
      %p149 = scmp.eq.s32.totalorder %s25, 0
      %p150 = por %p148, %p149
      %s151 = ssub.s32 %s26, %s38
      %p152 = scmp.eq.s32.totalorder %s151, 0
      %s154 = sadd.s32 %s153, 1
      %s155 = scalar_select %p152, %s153, %s154
      %p158 = pneg %p152
      %p159 = scmp.eq.s32.totalorder %s19, 1
      %p160 = por %p158, %p159
      %p161 = scmp.ne.s32.totalorder %s153, %s156
      %p162 = scmp.eq.s32.totalorder %s19, 0
      %p163 = por %p161, %p162
      %p164 = scmp.ne.s32.totalorder %s153, %s156
      %p165 = scmp.eq.s32.totalorder %s24, 1
      %p166 = por %p164, %p165
      %p167 = scmp.ne.s32.totalorder %s156, %s157
      %p168 = scmp.eq.s32.totalorder %s24, 0
      %p169 = por %p167, %p168
      %p170 = scmp.ne.s32.totalorder %s156, %s157
      %p171 = scmp.eq.s32.totalorder %s25, 1
      %p172 = por %p170, %p171
      %p174 = scmp.ne.s32.totalorder %s157, %s173
      %p175 = scmp.eq.s32.totalorder %s25, 0
      %p176 = por %p174, %p175
      %p177 = scmp.le.s32.totalorder 1, %s19
      %p178 = scmp.lt.s32.totalorder %s19, 3
      %p179 = pnand %p177, %p178
      %p180 = pneg %p179
      // Predicated region
      $region9: #{tpu_custom_call.1} parent=5 // pred_check
        _
      $region10: #{tpu_custom_call.1} parent=5 // pred_check_branch
        %182 = sbr.rel (%p179) target = $region12
      $region11: #{tpu_custom_call.1} parent=5 // pred_region
        %s183 = ssub.s32 %s19, 1
        // Predicated region
        $region13: #{tpu_custom_call.1} parent=11 // pred_check
          %p184 = pneg %p52
        $region14: #{tpu_custom_call.1} parent=11 // pred_check_branch
          %186 = sbr.rel (%p184) target = $region16
        $region15: #{tpu_custom_call.1} parent=11 // pred_region
          %188 = vsyncadd [#allocation7], 0
          %s190 = sshll.u32 %s0, 4
          %s191 = int_to_ptr.hbm [resolvable:$true] %s190
          %193 = dma.hbm_to_smem %s191, 16, [#allocation4], [#allocation7]
        $region16: #{tpu_custom_call.1} parent=11 // pred_fallthru
          _
        // Predicated region
        $region17: #{tpu_custom_call.1} parent=11 // pred_check
          %p194 = pneg %p101
        $region18: #{tpu_custom_call.1} parent=11 // pred_check_branch
          %196 = sbr.rel (%p194) target = $region20
        $region19: #{tpu_custom_call.1} parent=11 // pred_region
          %198 = vsyncadd [#allocation10], 0
          %s199 = sshll.u32 %s2, 4
          %s200 = int_to_ptr.hbm [resolvable:$true] %s199
          %s201 = sshll.u32 [#allocation9], 4
          %s202 = int_to_ptr.vmem [resolvable:$true] %s201
          %207 = dma.hbm_to_vmem [thread:$0]  %s200, 2048, %s202, [#allocation10], 128, 128, 8
        $region20: #{tpu_custom_call.1} parent=11 // pred_fallthru
          _
        // Predicated region
        $region21: #{tpu_custom_call.1} parent=11 // pred_check
          %p208 = pneg %p122
        $region22: #{tpu_custom_call.1} parent=11 // pred_check_branch
          %210 = sbr.rel (%p208) target = $region24
        $region23: #{tpu_custom_call.1} parent=11 // pred_region
          _
        $region24: #{tpu_custom_call.1} parent=11 // pred_fallthru
          _
        // Predicated region
        $region25: #{tpu_custom_call.1} parent=11 // pred_check
          %p211 = pneg %p143
        $region26: #{tpu_custom_call.1} parent=11 // pred_check_branch
          %213 = sbr.rel (%p211) target = $region28
        $region27: #{tpu_custom_call.1} parent=11 // pred_region
          %215 = vsyncadd [#allocation10], 0
          %s216 = sshll.u32 %s4, 4
          %s217 = int_to_ptr.hbm [resolvable:$true] %s216
          %s218 = sshll.u32 [#allocation11], 4
          %s219 = int_to_ptr.vmem [resolvable:$true] %s218
          %224 = dma.hbm_to_vmem [thread:$0]  %s217, 1024, %s219, [#allocation10], 64, 64, 4
        $region28: #{tpu_custom_call.1} parent=11 // pred_fallthru
          _
      $region12: #{tpu_custom_call.1} parent=5 // pred_fallthru
        _
      %p225 = scmp.lt.s32.totalorder %s19, 2
      // Predicated region
      $region29: #{tpu_custom_call.1} parent=5 // pred_check
        %p226 = pneg %p225
      $region30: #{tpu_custom_call.1} parent=5 // pred_check_branch
        %228 = sbr.rel (%p226) target = $region32
      $region31: #{tpu_custom_call.1} parent=5 // pred_region
        // Predicated region
        $region33: #{tpu_custom_call.1} parent=31 // pred_check
          %p229 = pneg %p74
        $region34: #{tpu_custom_call.1} parent=31 // pred_check_branch
          %231 = sbr.rel (%p229) target = $region36
        $region35: #{tpu_custom_call.1} parent=31 // pred_region
          %s232 = sand.u32 %s64, 1
          %s233 = scalar_lea.sflag [#allocation5], %s232
          %s234 = sand.u32 %s64, 1
          %s235 = smul.addr %s234, 192
          %s236 = scalar_lea.vmem [#allocation8], %s235
          %s237 = smul.u32 16, %s27
          %239 = vsyncadd %s233, 0
          %s240 = smul.addr %s26, 48
          %s241 = sadd.s32 %s237, %s240
          %s242 = smul.addr %s241, 4
          %s243 = scalar_lea.hbm %s1, %s242
          %s244 = sshll.u32 %s243, 4
          %s245 = int_to_ptr.hbm [resolvable:$true] %s244
          %s246 = sshll.u32 %s236, 4
          %s247 = int_to_ptr.vmem [resolvable:$true] %s246
          %252 = dma.hbm_to_vmem [thread:$0]  %s245, 3072, %s247, %s233, 64, 64, 4
        $region36: #{tpu_custom_call.1} parent=31 // pred_fallthru
          _
      $region32: #{tpu_custom_call.1} parent=5 // pred_fallthru
        _
      %p253 = scmp.le.s32.totalorder 1, %s19
      %p254 = scmp.lt.s32.totalorder %s19, 3
      %p255 = pnand %p253, %p254
      %p256 = pneg %p255
      // Predicated region
      $region37: #{tpu_custom_call.1} parent=5 // pred_check
        _
      $region38: #{tpu_custom_call.1} parent=5 // pred_check_branch
        %258 = sbr.rel (%p255) target = $region40
      $region39: #{tpu_custom_call.1} parent=5 // pred_region
        %s259 = ssub.s32 %s19, 1
        // Predicated region
        $region41: #{tpu_custom_call.1} parent=39 // pred_check
          %p260 = pneg %p52
        $region42: #{tpu_custom_call.1} parent=39 // pred_check_branch
          %262 = sbr.rel (%p260) target = $region44
        $region43: #{tpu_custom_call.1} parent=39 // pred_region
          %264 = dma.done [#allocation7], 16
        $region44: #{tpu_custom_call.1} parent=39 // pred_fallthru
          _
        %s265 = sand.u32 %s67, 1
        %s266 = scalar_lea.sflag [#allocation5], %s265
        %s267 = sand.u32 %s67, 1
        %s268 = smul.addr %s267, 192
        %s269 = scalar_lea.vmem [#allocation8], %s268
        // Predicated region
        $region45: #{tpu_custom_call.1} parent=39 // pred_check
          %p270 = pneg %p80
        $region46: #{tpu_custom_call.1} parent=39 // pred_check_branch
          %272 = sbr.rel (%p270) target = $region48
        $region47: #{tpu_custom_call.1} parent=39 // pred_region
          %274 = dma.done %s266, 3072
        $region48: #{tpu_custom_call.1} parent=39 // pred_fallthru
          _
        // Predicated region
        $region49: #{tpu_custom_call.1} parent=39 // pred_check
          %p275 = pneg %p101
        $region50: #{tpu_custom_call.1} parent=39 // pred_check_branch
          %277 = sbr.rel (%p275) target = $region52
        $region51: #{tpu_custom_call.1} parent=39 // pred_region
          %279 = dma.done [#allocation10], 2048
        $region52: #{tpu_custom_call.1} parent=39 // pred_fallthru
          _
        // Predicated region
        $region53: #{tpu_custom_call.1} parent=39 // pred_check
          %p280 = pneg %p143
        $region54: #{tpu_custom_call.1} parent=39 // pred_check_branch
          %282 = sbr.rel (%p280) target = $region56
        $region55: #{tpu_custom_call.1} parent=39 // pred_region
          %284 = dma.done [#allocation10], 1024
        $region56: #{tpu_custom_call.1} parent=39 // pred_fallthru
          _
        %285 = sfence
        %p286 = pneg %p52
        %p287 = pneg %p49
        %s288 = sand.u32 %s67, 1
        %s289 = scalar_lea.sflag [#allocation5], %s288
        %s290 = sand.u32 %s67, 1
        %s291 = smul.addr %s290, 192
        %s292 = scalar_lea.vmem [#allocation8], %s291
        %p293 = pneg %p80
        %p294 = pneg %p77
        %p295 = pneg %p101
        %p296 = pneg %p98
        %p297 = pneg %p122
        %p298 = pneg %p119
        %p299 = pneg %p143
        %p300 = pneg %p140
        %p301 = pneg %p169
        %p302 = pneg %p166
        %s303 = sand.u32 %s156, 1
        %s304 = scalar_lea.sflag [#allocation6], %s303
        %s305 = sand.u32 %s156, 1
        %s306 = smul.addr %s305, 128
        %s307 = scalar_lea.vmem [#allocation12], %s306
        %s308 = smul.u32 16, %s29
        %s309 = sld [smem:[#allocation4]]
        %v310 = vld [vmem:[%s269] sm:$0xf]
        %v311 = vld [vmem:[%s269 + $0x4] sm:$0xf]
        %v312 = vld [vmem:[%s269 + $0x8] sm:$0xf]
        %v313 = vld [vmem:[%s269 + $0xc] sm:$0xf]
        %v314 = vld [vmem:[%s269 + $0x10] sm:$0xf]
        %v315 = vld [vmem:[%s269 + $0x14] sm:$0xf]
        %v316 = vld [vmem:[%s269 + $0x18] sm:$0xf]
        %v317 = vld [vmem:[%s269 + $0x1c] sm:$0xf]
        %v318 = vld [vmem:[%s269 + $0x20] sm:$0xf]
        %v319 = vld [vmem:[%s269 + $0x24] sm:$0xf]
        %v320 = vld [vmem:[%s269 + $0x28] sm:$0xf]
        %v321 = vld [vmem:[%s269 + $0x2c] sm:$0xf]
        %v322 = vld [vmem:[%s269 + $0x30] sm:$0xf]
        %v323 = vld [vmem:[%s269 + $0x34] sm:$0xf]
        %v324 = vld [vmem:[%s269 + $0x38] sm:$0xf]
        %v325 = vld [vmem:[%s269 + $0x3c] sm:$0xf]
        %v326 = vunpack.c.l.bf16 %v310
        %v327 = vunpack.c.l.bf16 %v311
        %v328 = vunpack.c.l.bf16 %v312
        %v329 = vunpack.c.l.bf16 %v313
        %v330 = vunpack.c.l.bf16 %v314
        %v331 = vunpack.c.l.bf16 %v315
        %v332 = vunpack.c.l.bf16 %v316
        %v333 = vunpack.c.l.bf16 %v317
        %v334 = vunpack.c.l.bf16 %v318
        %v335 = vunpack.c.l.bf16 %v319
        %v336 = vunpack.c.l.bf16 %v320
        %v337 = vunpack.c.l.bf16 %v321
        %v338 = vunpack.c.l.bf16 %v322
        %v339 = vunpack.c.l.bf16 %v323
        %v340 = vunpack.c.l.bf16 %v324
        %v341 = vunpack.c.l.bf16 %v325
        %v342 = vstv %s309
        %v343 = vmul.f32 %v342, %v326
        %v344 = vmul.f32 %v342, %v327
        %v345 = vmul.f32 %v342, %v328
        %v346 = vmul.f32 %v342, %v329
        %v347 = vmul.f32 %v342, %v330
        %v348 = vmul.f32 %v342, %v331
        %v349 = vmul.f32 %v342, %v332
        %v350 = vmul.f32 %v342, %v333
        %v351 = vmul.f32 %v342, %v334
        %v352 = vmul.f32 %v342, %v335
        %v353 = vmul.f32 %v342, %v336
        %v354 = vmul.f32 %v342, %v337
        %v355 = vmul.f32 %v342, %v338
        %v356 = vmul.f32 %v342, %v339
        %v357 = vmul.f32 %v342, %v340
        %v358 = vmul.f32 %v342, %v341
        %s359 = sld [smem:[#allocation4 + $0x1]]
        %s360 = scalar_lea.vmem %s269, 64 [#allocation8]
        %v361 = vld [vmem:[%s360] sm:$0xf]
        %v362 = vld [vmem:[%s360 + $0x4] sm:$0xf]
        %v363 = vld [vmem:[%s360 + $0x8] sm:$0xf]
        %v364 = vld [vmem:[%s360 + $0xc] sm:$0xf]
        %v365 = vld [vmem:[%s360 + $0x10] sm:$0xf]
        %v366 = vld [vmem:[%s360 + $0x14] sm:$0xf]
        %v367 = vld [vmem:[%s360 + $0x18] sm:$0xf]
        %v368 = vld [vmem:[%s360 + $0x1c] sm:$0xf]
        %v369 = vld [vmem:[%s360 + $0x20] sm:$0xf]
        %v370 = vld [vmem:[%s360 + $0x24] sm:$0xf]
        %v371 = vld [vmem:[%s360 + $0x28] sm:$0xf]
        %v372 = vld [vmem:[%s360 + $0x2c] sm:$0xf]
        %v373 = vld [vmem:[%s360 + $0x30] sm:$0xf]
        %v374 = vld [vmem:[%s360 + $0x34] sm:$0xf]
        %v375 = vld [vmem:[%s360 + $0x38] sm:$0xf]
        %v376 = vld [vmem:[%s360 + $0x3c] sm:$0xf]
        %v377 = vunpack.c.l.bf16 %v361
        %v378 = vunpack.c.l.bf16 %v362
        %v379 = vunpack.c.l.bf16 %v363
        %v380 = vunpack.c.l.bf16 %v364
        %v381 = vunpack.c.l.bf16 %v365
        %v382 = vunpack.c.l.bf16 %v366
        %v383 = vunpack.c.l.bf16 %v367
        %v384 = vunpack.c.l.bf16 %v368
        %v385 = vunpack.c.l.bf16 %v369
        %v386 = vunpack.c.l.bf16 %v370
        %v387 = vunpack.c.l.bf16 %v371
        %v388 = vunpack.c.l.bf16 %v372
        %v389 = vunpack.c.l.bf16 %v373
        %v390 = vunpack.c.l.bf16 %v374
        %v391 = vunpack.c.l.bf16 %v375
        %v392 = vunpack.c.l.bf16 %v376
        %v393 = vstv %s359
        %v394 = vmul.f32 %v393, %v377
        %v395 = vmul.f32 %v393, %v378
        %v396 = vmul.f32 %v393, %v379
        %v397 = vmul.f32 %v393, %v380
        %v398 = vmul.f32 %v393, %v381
        %v399 = vmul.f32 %v393, %v382
        %v400 = vmul.f32 %v393, %v383
        %v401 = vmul.f32 %v393, %v384
        %v402 = vmul.f32 %v393, %v385
        %v403 = vmul.f32 %v393, %v386
        %v404 = vmul.f32 %v393, %v387
        %v405 = vmul.f32 %v393, %v388
        %v406 = vmul.f32 %v393, %v389
        %v407 = vmul.f32 %v393, %v390
        %v408 = vmul.f32 %v393, %v391
        %v409 = vmul.f32 %v393, %v392
        %v410 = vadd.f32 %v343, %v394
        %v411 = vadd.f32 %v344, %v395
        %v412 = vadd.f32 %v345, %v396
        %v413 = vadd.f32 %v346, %v397
        %v414 = vadd.f32 %v347, %v398
        %v415 = vadd.f32 %v348, %v399
        %v416 = vadd.f32 %v349, %v400
        %v417 = vadd.f32 %v350, %v401
        %v418 = vadd.f32 %v351, %v402
        %v419 = vadd.f32 %v352, %v403
        %v420 = vadd.f32 %v353, %v404
        %v421 = vadd.f32 %v354, %v405
        %v422 = vadd.f32 %v355, %v406
        %v423 = vadd.f32 %v356, %v407
        %v424 = vadd.f32 %v357, %v408
        %v425 = vadd.f32 %v358, %v409
        %s426 = sld [smem:[#allocation4 + $0x2]]
        %s427 = scalar_lea.vmem %s269, 128 [#allocation8]
        %v428 = vld [vmem:[%s427] sm:$0xf]
        %v429 = vld [vmem:[%s427 + $0x4] sm:$0xf]
        %v430 = vld [vmem:[%s427 + $0x8] sm:$0xf]
        %v431 = vld [vmem:[%s427 + $0xc] sm:$0xf]
        %v432 = vld [vmem:[%s427 + $0x10] sm:$0xf]
        %v433 = vld [vmem:[%s427 + $0x14] sm:$0xf]
        %v434 = vld [vmem:[%s427 + $0x18] sm:$0xf]
        %v435 = vld [vmem:[%s427 + $0x1c] sm:$0xf]
        %v436 = vld [vmem:[%s427 + $0x20] sm:$0xf]
        %v437 = vld [vmem:[%s427 + $0x24] sm:$0xf]
        %v438 = vld [vmem:[%s427 + $0x28] sm:$0xf]
        %v439 = vld [vmem:[%s427 + $0x2c] sm:$0xf]
        %v440 = vld [vmem:[%s427 + $0x30] sm:$0xf]
        %v441 = vld [vmem:[%s427 + $0x34] sm:$0xf]
        %v442 = vld [vmem:[%s427 + $0x38] sm:$0xf]
        %v443 = vld [vmem:[%s427 + $0x3c] sm:$0xf]
        %v444 = vunpack.c.l.bf16 %v428
        %v445 = vunpack.c.l.bf16 %v429
        %v446 = vunpack.c.l.bf16 %v430
        %v447 = vunpack.c.l.bf16 %v431
        %v448 = vunpack.c.l.bf16 %v432
        %v449 = vunpack.c.l.bf16 %v433
        %v450 = vunpack.c.l.bf16 %v434
        %v451 = vunpack.c.l.bf16 %v435
        %v452 = vunpack.c.l.bf16 %v436
        %v453 = vunpack.c.l.bf16 %v437
        %v454 = vunpack.c.l.bf16 %v438
        %v455 = vunpack.c.l.bf16 %v439
        %v456 = vunpack.c.l.bf16 %v440
        %v457 = vunpack.c.l.bf16 %v441
        %v458 = vunpack.c.l.bf16 %v442
        %v459 = vunpack.c.l.bf16 %v443
        %v460 = vstv %s426
        %v461 = vmul.f32 %v460, %v444
        %v462 = vmul.f32 %v460, %v445
        %v463 = vmul.f32 %v460, %v446
        %v464 = vmul.f32 %v460, %v447
        %v465 = vmul.f32 %v460, %v448
        %v466 = vmul.f32 %v460, %v449
        %v467 = vmul.f32 %v460, %v450
        %v468 = vmul.f32 %v460, %v451
        %v469 = vmul.f32 %v460, %v452
        %v470 = vmul.f32 %v460, %v453
        %v471 = vmul.f32 %v460, %v454
        %v472 = vmul.f32 %v460, %v455
        %v473 = vmul.f32 %v460, %v456
        %v474 = vmul.f32 %v460, %v457
        %v475 = vmul.f32 %v460, %v458
        %v476 = vmul.f32 %v460, %v459
        %v477 = vadd.f32 %v410, %v461
        %v478 = vadd.f32 %v411, %v462
        %v479 = vadd.f32 %v412, %v463
        %v480 = vadd.f32 %v413, %v464
        %v481 = vadd.f32 %v414, %v465
        %v482 = vadd.f32 %v415, %v466
        %v483 = vadd.f32 %v416, %v467
        %v484 = vadd.f32 %v417, %v468
        %v485 = vadd.f32 %v418, %v469
        %v486 = vadd.f32 %v419, %v470
        %v487 = vadd.f32 %v420, %v471
        %v488 = vadd.f32 %v421, %v472
        %v489 = vadd.f32 %v422, %v473
        %v490 = vadd.f32 %v423, %v474
        %v491 = vadd.f32 %v424, %v475
        %v492 = vadd.f32 %v425, %v476
        %v493 = vpack.c.bf16 %v478, %v477
        %v494 = vpack.c.bf16 %v480, %v479
        %v495 = vpack.c.bf16 %v482, %v481
        %v496 = vpack.c.bf16 %v484, %v483
        %v497 = vpack.c.bf16 %v486, %v485
        %v498 = vpack.c.bf16 %v488, %v487
        %v499 = vpack.c.bf16 %v490, %v489
        %v500 = vpack.c.bf16 %v492, %v491
        %v501 = vld [vmem:[#allocation9] sm:$0xff]
        %v502 = vld [vmem:[#allocation9 + $0x8] sm:$0xff]
        %v503 = vld [vmem:[#allocation9 + $0x10] sm:$0xff]
        %v504 = vld [vmem:[#allocation9 + $0x18] sm:$0xff]
        %v505 = vld [vmem:[#allocation9 + $0x20] sm:$0xff]
        %v506 = vld [vmem:[#allocation9 + $0x28] sm:$0xff]
        %v507 = vld [vmem:[#allocation9 + $0x30] sm:$0xff]
        %v508 = vld [vmem:[#allocation9 + $0x38] sm:$0xff]
        %v509 = vld [vmem:[#allocation9 + $0x40] sm:$0xff]
        %v510 = vld [vmem:[#allocation9 + $0x48] sm:$0xff]
        %v511 = vld [vmem:[#allocation9 + $0x50] sm:$0xff]
        %v512 = vld [vmem:[#allocation9 + $0x58] sm:$0xff]
        %v513 = vld [vmem:[#allocation9 + $0x60] sm:$0xff]
        %v514 = vld [vmem:[#allocation9 + $0x68] sm:$0xff]
        %v515 = vld [vmem:[#allocation9 + $0x70] sm:$0xff]
        %v516 = vld [vmem:[#allocation9 + $0x78] sm:$0xff]
        %v517 = vld [vmem:[%s3] sm:$0x3]
        %v519 = vperm.slane %v517, 0
        %v520 = vperm.slane %v517, 1
        %v539 = vunpack.c.l.b16 %v501
        %v540 = vunpack.c.h.b16 %v501
        %v541 = vunpack.c.l.b16 %v502
        %v542 = vunpack.c.h.b16 %v502
        %v543 = vunpack.c.l.b16 %v503
        %v544 = vunpack.c.h.b16 %v503
        %v545 = vunpack.c.l.b16 %v504
        %v546 = vunpack.c.h.b16 %v504
        %v547 = vunpack.c.l.b16 %v505
        %v548 = vunpack.c.h.b16 %v505
        %v549 = vunpack.c.l.b16 %v506
        %v550 = vunpack.c.h.b16 %v506
        %v551 = vunpack.c.l.b16 %v507
        %v552 = vunpack.c.h.b16 %v507
        %v553 = vunpack.c.l.b16 %v508
        %v554 = vunpack.c.h.b16 %v508
        %v555 = vunpack.c.l.b16 %v509
        %v556 = vunpack.c.h.b16 %v509
        %v557 = vunpack.c.l.b16 %v510
        %v558 = vunpack.c.h.b16 %v510
        %v559 = vunpack.c.l.b16 %v511
        %v560 = vunpack.c.h.b16 %v511
        %v561 = vunpack.c.l.b16 %v512
        %v562 = vunpack.c.h.b16 %v512
        %v563 = vunpack.c.l.b16 %v513
        %v564 = vunpack.c.h.b16 %v513
        %v565 = vunpack.c.l.b16 %v514
        %v566 = vunpack.c.h.b16 %v514
        %v567 = vunpack.c.l.b16 %v515
        %v568 = vunpack.c.h.b16 %v515
        %v569 = vunpack.c.l.b16 %v516
        %v570 = vunpack.c.h.b16 %v516
        %v571 = vpack.c.b16 %v541, %v539
        %v572 = vpack.c.b16 %v542, %v540
        %v573 = vpack.c.b16 %v545, %v543
        %v574 = vpack.c.b16 %v546, %v544
        %v575 = vpack.c.b16 %v549, %v547
        %v576 = vpack.c.b16 %v550, %v548
        %v577 = vpack.c.b16 %v553, %v551
        %v578 = vpack.c.b16 %v554, %v552
        %v579 = vpack.c.b16 %v557, %v555
        %v580 = vpack.c.b16 %v558, %v556
        %v581 = vpack.c.b16 %v561, %v559
        %v582 = vpack.c.b16 %v562, %v560
        %v583 = vpack.c.b16 %v565, %v563
        %v584 = vpack.c.b16 %v566, %v564
        %v585 = vpack.c.b16 %v569, %v567
        %v586 = vpack.c.b16 %v570, %v568
        %603 = vmatpush.bf16.msra.mxu0 %v585
        %604 = vmatpush.bf16.msra.mxu0 %v583
        %605 = vmatpush.bf16.msra.mxu0 %v581
        %606 = vmatpush.bf16.msra.mxu0 %v579
        %607 = vmatpush.bf16.msra.mxu0 %v577
        %608 = vmatpush.bf16.msra.mxu0 %v575
        %609 = vmatpush.bf16.msra.mxu0 %v573
        %610 = vmatpush.bf16.msra.mxu0 %v571
        %611 = vmatmul.bf16.gmra.mxu0 %v493
        %v612 = vpop.f32.mrf.mxu0
        %v613 = vadd.f32 %v519, %v612
        %v614 = vpop.f32.mrf.mxu0
        %v615 = vadd.f32 %v519, %v614
        %616 = vmatmul.bf16.gmra.mxu0 %v494
        %v617 = vpop.f32.mrf.mxu0
        %v618 = vadd.f32 %v519, %v617
        %v619 = vpop.f32.mrf.mxu0
        %v620 = vadd.f32 %v519, %v619
        %621 = vmatmul.bf16.gmra.mxu0 %v495
        %v622 = vpop.f32.mrf.mxu0
        %v623 = vadd.f32 %v519, %v622
        %v624 = vpop.f32.mrf.mxu0
        %v625 = vadd.f32 %v519, %v624
        %626 = vmatmul.bf16.gmra.mxu0 %v496
        %v627 = vpop.f32.mrf.mxu0
        %v628 = vadd.f32 %v519, %v627
        %v629 = vpop.f32.mrf.mxu0
        %v630 = vadd.f32 %v519, %v629
        %631 = vmatmul.bf16.gmra.mxu0 %v497
        %v632 = vpop.f32.mrf.mxu0
        %v633 = vadd.f32 %v519, %v632
        %v634 = vpop.f32.mrf.mxu0
        %v635 = vadd.f32 %v519, %v634
        %636 = vmatmul.bf16.gmra.mxu0 %v498
        %v637 = vpop.f32.mrf.mxu0
        %v638 = vadd.f32 %v519, %v637
        %v639 = vpop.f32.mrf.mxu0
        %v640 = vadd.f32 %v519, %v639
        %641 = vmatmul.bf16.gmra.mxu0 %v499
        %v642 = vpop.f32.mrf.mxu0
        %v643 = vadd.f32 %v519, %v642
        %v644 = vpop.f32.mrf.mxu0
        %v645 = vadd.f32 %v519, %v644
        %646 = vmatmul.bf16.gmra.mxu0 %v500
        %v647 = vpop.f32.mrf.mxu0
        %v648 = vadd.f32 %v519, %v647
        %v649 = vpop.f32.mrf.mxu0
        %v650 = vadd.f32 %v519, %v649
        %651 = vdwg.mxu0
        %652 = vmatpush.bf16.msra.mxu0 %v586
        %653 = vmatpush.bf16.msra.mxu0 %v584
        %654 = vmatpush.bf16.msra.mxu0 %v582
        %655 = vmatpush.bf16.msra.mxu0 %v580
        %656 = vmatpush.bf16.msra.mxu0 %v578
        %657 = vmatpush.bf16.msra.mxu0 %v576
        %658 = vmatpush.bf16.msra.mxu0 %v574
        %659 = vmatpush.bf16.msra.mxu0 %v572
        %660 = vmatmul.bf16.gmra.mxu0 %v493
        %v661 = vpop.f32.mrf.mxu0
        %v662 = vadd.f32 %v520, %v661
        %v663 = vpop.f32.mrf.mxu0
        %v664 = vadd.f32 %v520, %v663
        %665 = vmatmul.bf16.gmra.mxu0 %v494
        %v666 = vpop.f32.mrf.mxu0
        %v667 = vadd.f32 %v520, %v666
        %v668 = vpop.f32.mrf.mxu0
        %v669 = vadd.f32 %v520, %v668
        %670 = vmatmul.bf16.gmra.mxu0 %v495
        %v671 = vpop.f32.mrf.mxu0
        %v672 = vadd.f32 %v520, %v671
        %v673 = vpop.f32.mrf.mxu0
        %v674 = vadd.f32 %v520, %v673
        %675 = vmatmul.bf16.gmra.mxu0 %v496
        %v676 = vpop.f32.mrf.mxu0
        %v677 = vadd.f32 %v520, %v676
        %v678 = vpop.f32.mrf.mxu0
        %v679 = vadd.f32 %v520, %v678
        %680 = vmatmul.bf16.gmra.mxu0 %v497
        %v681 = vpop.f32.mrf.mxu0
        %v682 = vadd.f32 %v520, %v681
        %v683 = vpop.f32.mrf.mxu0
        %v684 = vadd.f32 %v520, %v683
        %685 = vmatmul.bf16.gmra.mxu0 %v498
        %v686 = vpop.f32.mrf.mxu0
        %v687 = vadd.f32 %v520, %v686
        %v688 = vpop.f32.mrf.mxu0
        %v689 = vadd.f32 %v520, %v688
        %690 = vmatmul.bf16.gmra.mxu0 %v499
        %v691 = vpop.f32.mrf.mxu0
        %v692 = vadd.f32 %v520, %v691
        %v693 = vpop.f32.mrf.mxu0
        %v694 = vadd.f32 %v520, %v693
        %695 = vmatmul.bf16.gmra.mxu0 %v500
        %v696 = vpop.f32.mrf.mxu0
        %v697 = vadd.f32 %v520, %v696
        %v698 = vpop.f32.mrf.mxu0
        %v699 = vadd.f32 %v520, %v698
        %700 = vdwg.mxu0
        %vm701 = vcmp.gt.f32.partialorder %v613, 0.0
        %vm702 = vcmp.gt.f32.partialorder %v662, 0.0
        %vm703 = vcmp.gt.f32.partialorder %v615, 0.0
        %vm704 = vcmp.gt.f32.partialorder %v664, 0.0
        %vm705 = vcmp.gt.f32.partialorder %v618, 0.0
        %vm706 = vcmp.gt.f32.partialorder %v667, 0.0
        %vm707 = vcmp.gt.f32.partialorder %v620, 0.0
        %vm708 = vcmp.gt.f32.partialorder %v669, 0.0
        %vm709 = vcmp.gt.f32.partialorder %v623, 0.0
        %vm710 = vcmp.gt.f32.partialorder %v672, 0.0
        %vm711 = vcmp.gt.f32.partialorder %v625, 0.0
        %vm712 = vcmp.gt.f32.partialorder %v674, 0.0
        %vm713 = vcmp.gt.f32.partialorder %v628, 0.0
        %vm714 = vcmp.gt.f32.partialorder %v677, 0.0
        %vm715 = vcmp.gt.f32.partialorder %v630, 0.0
        %vm716 = vcmp.gt.f32.partialorder %v679, 0.0
        %vm717 = vcmp.gt.f32.partialorder %v633, 0.0
        %vm718 = vcmp.gt.f32.partialorder %v682, 0.0
        %vm719 = vcmp.gt.f32.partialorder %v635, 0.0
        %vm720 = vcmp.gt.f32.partialorder %v684, 0.0
        %vm721 = vcmp.gt.f32.partialorder %v638, 0.0
        %vm722 = vcmp.gt.f32.partialorder %v687, 0.0
        %vm723 = vcmp.gt.f32.partialorder %v640, 0.0
        %vm724 = vcmp.gt.f32.partialorder %v689, 0.0
        %vm725 = vcmp.gt.f32.partialorder %v643, 0.0
        %vm726 = vcmp.gt.f32.partialorder %v692, 0.0
        %vm727 = vcmp.gt.f32.partialorder %v645, 0.0
        %vm728 = vcmp.gt.f32.partialorder %v694, 0.0
        %vm729 = vcmp.gt.f32.partialorder %v648, 0.0
        %vm730 = vcmp.gt.f32.partialorder %v697, 0.0
        %vm731 = vcmp.gt.f32.partialorder %v650, 0.0
        %vm732 = vcmp.gt.f32.partialorder %v699, 0.0
        %v733 = vmul.f32 %v613, 0.01
        %v734 = vmul.f32 %v662, 0.01
        %v735 = vmul.f32 %v615, 0.01
        %v736 = vmul.f32 %v664, 0.01
        %v737 = vmul.f32 %v618, 0.01
        %v738 = vmul.f32 %v667, 0.01
        %v739 = vmul.f32 %v620, 0.01
        %v740 = vmul.f32 %v669, 0.01
        %v741 = vmul.f32 %v623, 0.01
        %v742 = vmul.f32 %v672, 0.01
        %v743 = vmul.f32 %v625, 0.01
        %v744 = vmul.f32 %v674, 0.01
        %v745 = vmul.f32 %v628, 0.01
        %v746 = vmul.f32 %v677, 0.01
        %v747 = vmul.f32 %v630, 0.01
        %v748 = vmul.f32 %v679, 0.01
        %v749 = vmul.f32 %v633, 0.01
        %v750 = vmul.f32 %v682, 0.01
        %v751 = vmul.f32 %v635, 0.01
        %v752 = vmul.f32 %v684, 0.01
        %v753 = vmul.f32 %v638, 0.01
        %v754 = vmul.f32 %v687, 0.01
        %v755 = vmul.f32 %v640, 0.01
        %v756 = vmul.f32 %v689, 0.01
        %v757 = vmul.f32 %v643, 0.01
        %v758 = vmul.f32 %v692, 0.01
        %v759 = vmul.f32 %v645, 0.01
        %v760 = vmul.f32 %v694, 0.01
        %v761 = vmul.f32 %v648, 0.01
        %v762 = vmul.f32 %v697, 0.01
        %v763 = vmul.f32 %v650, 0.01
        %v764 = vmul.f32 %v699, 0.01
        %v765 = vsel %vm701, %v613, %v733
        %v766 = vsel %vm702, %v662, %v734
        %v767 = vsel %vm703, %v615, %v735
        %v768 = vsel %vm704, %v664, %v736
        %v769 = vsel %vm705, %v618, %v737
        %v770 = vsel %vm706, %v667, %v738
        %v771 = vsel %vm707, %v620, %v739
        %v772 = vsel %vm708, %v669, %v740
        %v773 = vsel %vm709, %v623, %v741
        %v774 = vsel %vm710, %v672, %v742
        %v775 = vsel %vm711, %v625, %v743
        %v776 = vsel %vm712, %v674, %v744
        %v777 = vsel %vm713, %v628, %v745
        %v778 = vsel %vm714, %v677, %v746
        %v779 = vsel %vm715, %v630, %v747
        %v780 = vsel %vm716, %v679, %v748
        %v781 = vsel %vm717, %v633, %v749
        %v782 = vsel %vm718, %v682, %v750
        %v783 = vsel %vm719, %v635, %v751
        %v784 = vsel %vm720, %v684, %v752
        %v785 = vsel %vm721, %v638, %v753
        %v786 = vsel %vm722, %v687, %v754
        %v787 = vsel %vm723, %v640, %v755
        %v788 = vsel %vm724, %v689, %v756
        %v789 = vsel %vm725, %v643, %v757
        %v790 = vsel %vm726, %v692, %v758
        %v791 = vsel %vm727, %v645, %v759
        %v792 = vsel %vm728, %v694, %v760
        %v793 = vsel %vm729, %v648, %v761
        %v794 = vsel %vm730, %v697, %v762
        %v795 = vsel %vm731, %v650, %v763
        %v796 = vsel %vm732, %v699, %v764
        %v797 = vpack.c.bf16 %v767, %v765
        %v798 = vpack.c.bf16 %v771, %v769
        %v799 = vpack.c.bf16 %v775, %v773
        %v800 = vpack.c.bf16 %v779, %v777
        %v801 = vpack.c.bf16 %v783, %v781
        %v802 = vpack.c.bf16 %v787, %v785
        %v803 = vpack.c.bf16 %v791, %v789
        %v804 = vpack.c.bf16 %v795, %v793
        %v805 = vpack.c.bf16 %v766, %v766
        %v806 = vpack.c.bf16 %v768, %v768
        %v807 = vpack.c.bf16 %v770, %v770
        %v808 = vpack.c.bf16 %v772, %v772
        %v809 = vpack.c.bf16 %v774, %v774
        %v810 = vpack.c.bf16 %v776, %v776
        %v811 = vpack.c.bf16 %v778, %v778
        %v812 = vpack.c.bf16 %v780, %v780
        %v813 = vpack.c.bf16 %v782, %v782
        %v814 = vpack.c.bf16 %v784, %v784
        %v815 = vpack.c.bf16 %v786, %v786
        %v816 = vpack.c.bf16 %v788, %v788
        %v817 = vpack.c.bf16 %v790, %v790
        %v818 = vpack.c.bf16 %v792, %v792
        %v819 = vpack.c.bf16 %v794, %v794
        %v820 = vpack.c.bf16 %v796, %v796
        %v821 = vld [vmem:[#allocation11] sm:$0xf]
        %v822 = vld [vmem:[#allocation11 + $0x4] sm:$0xf]
        %v823 = vld [vmem:[#allocation11 + $0x8] sm:$0xf]
        %v824 = vld [vmem:[#allocation11 + $0xc] sm:$0xf]
        %v825 = vld [vmem:[#allocation11 + $0x10] sm:$0xf]
        %v826 = vld [vmem:[#allocation11 + $0x14] sm:$0xf]
        %v827 = vld [vmem:[#allocation11 + $0x18] sm:$0xf]
        %v828 = vld [vmem:[#allocation11 + $0x1c] sm:$0xf]
        %v829 = vld [vmem:[#allocation11 + $0x20] sm:$0xf]
        %v830 = vld [vmem:[#allocation11 + $0x24] sm:$0xf]
        %v831 = vld [vmem:[#allocation11 + $0x28] sm:$0xf]
        %v832 = vld [vmem:[#allocation11 + $0x2c] sm:$0xf]
        %v833 = vld [vmem:[#allocation11 + $0x30] sm:$0xf]
        %v834 = vld [vmem:[#allocation11 + $0x34] sm:$0xf]
        %v835 = vld [vmem:[#allocation11 + $0x38] sm:$0xf]
        %v836 = vld [vmem:[#allocation11 + $0x3c] sm:$0xf]
        %v853 = vunpack.c.l.b16 %v821
        %v854 = vunpack.c.l.b16 %v822
        %v855 = vunpack.c.l.b16 %v823
        %v856 = vunpack.c.l.b16 %v824
        %v857 = vunpack.c.l.b16 %v825
        %v858 = vunpack.c.l.b16 %v826
        %v859 = vunpack.c.l.b16 %v827
        %v860 = vunpack.c.l.b16 %v828
        %v861 = vunpack.c.l.b16 %v829
        %v862 = vunpack.c.l.b16 %v830
        %v863 = vunpack.c.l.b16 %v831
        %v864 = vunpack.c.l.b16 %v832
        %v865 = vunpack.c.l.b16 %v833
        %v866 = vunpack.c.l.b16 %v834
        %v867 = vunpack.c.l.b16 %v835
        %v868 = vunpack.c.l.b16 %v836
        %v869 = vpack.c.b16 %v854, %v853
        %v870 = vpack.c.b16 %v856, %v855
        %v871 = vpack.c.b16 %v858, %v857
        %v872 = vpack.c.b16 %v860, %v859
        %v873 = vpack.c.b16 %v862, %v861
        %v874 = vpack.c.b16 %v864, %v863
        %v875 = vpack.c.b16 %v866, %v865
        %v876 = vpack.c.b16 %v868, %v867
        %885 = vmatpush.bf16.msra.mxu0 %v876
        %886 = vmatpush.bf16.msra.mxu0 %v875
        %887 = vmatpush.bf16.msra.mxu0 %v874
        %888 = vmatpush.bf16.msra.mxu0 %v873
        %889 = vmatpush.bf16.msra.mxu0 %v872
        %890 = vmatpush.bf16.msra.mxu0 %v871
        %891 = vmatpush.bf16.msra.mxu0 %v870
        %892 = vmatpush.bf16.msra.mxu0 %v869
        %893 = vmatmul.bf16.gmra.mxu0 %v797
        %v894 = vpop.f32.mrf.mxu0
        %v895 = vadd.f32 0.0, %v894
        %v896 = vpop.f32.mrf.mxu0
        %v897 = vadd.f32 0.0, %v896
        %898 = vmatmul.bf16.gmra.mxu0 %v798
        %v899 = vpop.f32.mrf.mxu0
        %v900 = vadd.f32 0.0, %v899
        %v901 = vpop.f32.mrf.mxu0
        %v902 = vadd.f32 0.0, %v901
        %903 = vmatmul.bf16.gmra.mxu0 %v799
        %v904 = vpop.f32.mrf.mxu0
        %v905 = vadd.f32 0.0, %v904
        %v906 = vpop.f32.mrf.mxu0
        %v907 = vadd.f32 0.0, %v906
        %908 = vmatmul.bf16.gmra.mxu0 %v800
        %v909 = vpop.f32.mrf.mxu0
        %v910 = vadd.f32 0.0, %v909
        %v911 = vpop.f32.mrf.mxu0
        %v912 = vadd.f32 0.0, %v911
        %913 = vmatmul.bf16.gmra.mxu0 %v801
        %v914 = vpop.f32.mrf.mxu0
        %v915 = vadd.f32 0.0, %v914
        %v916 = vpop.f32.mrf.mxu0
        %v917 = vadd.f32 0.0, %v916
        %918 = vmatmul.bf16.gmra.mxu0 %v802
        %v919 = vpop.f32.mrf.mxu0
        %v920 = vadd.f32 0.0, %v919
        %v921 = vpop.f32.mrf.mxu0
        %v922 = vadd.f32 0.0, %v921
        %923 = vmatmul.bf16.gmra.mxu0 %v803
        %v924 = vpop.f32.mrf.mxu0
        %v925 = vadd.f32 0.0, %v924
        %v926 = vpop.f32.mrf.mxu0
        %v927 = vadd.f32 0.0, %v926
        %928 = vmatmul.bf16.gmra.mxu0 %v804
        %v929 = vpop.f32.mrf.mxu0
        %v930 = vadd.f32 0.0, %v929
        %v931 = vpop.f32.mrf.mxu0
        %v932 = vadd.f32 0.0, %v931
        %933 = vdwg.mxu0
        %s934 = smul.u32 %s29, 128
        %v935 = vpack.c.bf16 %v895, %v895
        %v936 = vpack.c.bf16 %v897, %v897
        %v937 = vpack.c.bf16 %v900, %v900
        %v938 = vpack.c.bf16 %v902, %v902
        %v939 = vpack.c.bf16 %v905, %v905
        %v940 = vpack.c.bf16 %v907, %v907
        %v941 = vpack.c.bf16 %v910, %v910
        %v942 = vpack.c.bf16 %v912, %v912
        %v943 = vpack.c.bf16 %v915, %v915
        %v944 = vpack.c.bf16 %v917, %v917
        %v945 = vpack.c.bf16 %v920, %v920
        %v946 = vpack.c.bf16 %v922, %v922
        %v947 = vpack.c.bf16 %v925, %v925
        %v948 = vpack.c.bf16 %v927, %v927
        %v949 = vpack.c.bf16 %v930, %v930
        %v950 = vpack.c.bf16 %v932, %v932
        %s951 = sshra.s32 %s934, 3
        %s952 = sand.u32 %s934, 7
        %s953 = smul.addr %s951, 4
        %s954 = scalar_lea.vmem [#allocation2], %s953
        %955 = vst [vmem:[%s954] sm:$0xf] %v935
        %956 = vst [vmem:[%s954 + $0x4] sm:$0xf] %v936
        %957 = vst [vmem:[%s954 + $0x8] sm:$0xf] %v937
        %958 = vst [vmem:[%s954 + $0xc] sm:$0xf] %v938
        %959 = vst [vmem:[%s954 + $0x10] sm:$0xf] %v939
        %960 = vst [vmem:[%s954 + $0x14] sm:$0xf] %v940
        %961 = vst [vmem:[%s954 + $0x18] sm:$0xf] %v941
        %962 = vst [vmem:[%s954 + $0x1c] sm:$0xf] %v942
        %963 = vst [vmem:[%s954 + $0x20] sm:$0xf] %v943
        %964 = vst [vmem:[%s954 + $0x24] sm:$0xf] %v944
        %965 = vst [vmem:[%s954 + $0x28] sm:$0xf] %v945
        %966 = vst [vmem:[%s954 + $0x2c] sm:$0xf] %v946
        %967 = vst [vmem:[%s954 + $0x30] sm:$0xf] %v947
        %968 = vst [vmem:[%s954 + $0x34] sm:$0xf] %v948
        %969 = vst [vmem:[%s954 + $0x38] sm:$0xf] %v949
        %970 = vst [vmem:[%s954 + $0x3c] sm:$0xf] %v950
        %s971 = smul.addr %s951, 4
        %s972 = scalar_lea.vmem [#allocation3], %s971
        %973 = vst [vmem:[%s972] sm:$0xf] %v805
        %974 = vst [vmem:[%s972 + $0x4] sm:$0xf] %v806
        %975 = vst [vmem:[%s972 + $0x8] sm:$0xf] %v807
        %976 = vst [vmem:[%s972 + $0xc] sm:$0xf] %v808
        %977 = vst [vmem:[%s972 + $0x10] sm:$0xf] %v809
        %978 = vst [vmem:[%s972 + $0x14] sm:$0xf] %v810
        %979 = vst [vmem:[%s972 + $0x18] sm:$0xf] %v811
        %980 = vst [vmem:[%s972 + $0x1c] sm:$0xf] %v812
        %981 = vst [vmem:[%s972 + $0x20] sm:$0xf] %v813
        %982 = vst [vmem:[%s972 + $0x24] sm:$0xf] %v814
        %983 = vst [vmem:[%s972 + $0x28] sm:$0xf] %v815
        %984 = vst [vmem:[%s972 + $0x2c] sm:$0xf] %v816
        %985 = vst [vmem:[%s972 + $0x30] sm:$0xf] %v817
        %986 = vst [vmem:[%s972 + $0x34] sm:$0xf] %v818
        %987 = vst [vmem:[%s972 + $0x38] sm:$0xf] %v819
        %988 = vst [vmem:[%s972 + $0x3c] sm:$0xf] %v820
        %p989 = scmp.eq.s32.totalorder %s29, 0
        // Predicated region
        $region57: #{tpu_custom_call.1} parent=39 // pred_check
          %p990 = pneg %p989
        $region58: #{tpu_custom_call.1} parent=39 // pred_check_branch
          %992 = sbr.rel (%p990) target = $region60
        $region59: #{tpu_custom_call.1} parent=39 // pred_region
          %v993 = vld [vmem:[#allocation3] sm:$0xf]
          %v994 = vld [vmem:[#allocation3 + $0x4] sm:$0xf]
          %v995 = vld [vmem:[#allocation3 + $0x8] sm:$0xf]
          %v996 = vld [vmem:[#allocation3 + $0xc] sm:$0xf]
          %v997 = vld [vmem:[#allocation3 + $0x10] sm:$0xf]
          %v998 = vld [vmem:[#allocation3 + $0x14] sm:$0xf]
          %v999 = vld [vmem:[#allocation3 + $0x18] sm:$0xf]
          %v1000 = vld [vmem:[#allocation3 + $0x1c] sm:$0xf]
          %v1001 = vld [vmem:[#allocation3 + $0x20] sm:$0xf]
          %v1002 = vld [vmem:[#allocation3 + $0x24] sm:$0xf]
          %v1003 = vld [vmem:[#allocation3 + $0x28] sm:$0xf]
          %v1004 = vld [vmem:[#allocation3 + $0x2c] sm:$0xf]
          %v1005 = vld [vmem:[#allocation3 + $0x30] sm:$0xf]
          %v1006 = vld [vmem:[#allocation3 + $0x34] sm:$0xf]
          %v1007 = vld [vmem:[#allocation3 + $0x38] sm:$0xf]
          %v1008 = vld [vmem:[#allocation3 + $0x3c] sm:$0xf]
          %v1009 = vld [vmem:[#allocation2] sm:$0xf]
          %v1010 = vld [vmem:[#allocation2 + $0x4] sm:$0xf]
          %v1011 = vld [vmem:[#allocation2 + $0x8] sm:$0xf]
          %v1012 = vld [vmem:[#allocation2 + $0xc] sm:$0xf]
          %v1013 = vld [vmem:[#allocation2 + $0x10] sm:$0xf]
          %v1014 = vld [vmem:[#allocation2 + $0x14] sm:$0xf]
          %v1015 = vld [vmem:[#allocation2 + $0x18] sm:$0xf]
          %v1016 = vld [vmem:[#allocation2 + $0x1c] sm:$0xf]
          %v1017 = vld [vmem:[#allocation2 + $0x20] sm:$0xf]
          %v1018 = vld [vmem:[#allocation2 + $0x24] sm:$0xf]
          %v1019 = vld [vmem:[#allocation2 + $0x28] sm:$0xf]
          %v1020 = vld [vmem:[#allocation2 + $0x2c] sm:$0xf]
          %v1021 = vld [vmem:[#allocation2 + $0x30] sm:$0xf]
          %v1022 = vld [vmem:[#allocation2 + $0x34] sm:$0xf]
          %v1023 = vld [vmem:[#allocation2 + $0x38] sm:$0xf]
          %v1024 = vld [vmem:[#allocation2 + $0x3c] sm:$0xf]
          %v1041 = vunpack.c.l.b16 %v993
          %v1042 = vunpack.c.l.b16 %v994
          %v1043 = vunpack.c.l.b16 %v995
          %v1044 = vunpack.c.l.b16 %v996
          %v1045 = vunpack.c.l.b16 %v997
          %v1046 = vunpack.c.l.b16 %v998
          %v1047 = vunpack.c.l.b16 %v999
          %v1048 = vunpack.c.l.b16 %v1000
          %v1049 = vunpack.c.l.b16 %v1001
          %v1050 = vunpack.c.l.b16 %v1002
          %v1051 = vunpack.c.l.b16 %v1003
          %v1052 = vunpack.c.l.b16 %v1004
          %v1053 = vunpack.c.l.b16 %v1005
          %v1054 = vunpack.c.l.b16 %v1006
          %v1055 = vunpack.c.l.b16 %v1007
          %v1056 = vunpack.c.l.b16 %v1008
          %v1057 = vpack.c.b16 %v1042, %v1041
          %v1058 = vpack.c.b16 %v1044, %v1043
          %v1059 = vpack.c.b16 %v1046, %v1045
          %v1060 = vpack.c.b16 %v1048, %v1047
          %v1061 = vpack.c.b16 %v1050, %v1049
          %v1062 = vpack.c.b16 %v1052, %v1051
          %v1063 = vpack.c.b16 %v1054, %v1053
          %v1064 = vpack.c.b16 %v1056, %v1055
          %v1089 = vunpack.c.l.b16 %v1009
          %v1090 = vunpack.c.l.b16 %v1010
          %v1091 = vunpack.c.l.b16 %v1011
          %v1092 = vunpack.c.l.b16 %v1012
          %v1093 = vunpack.c.l.b16 %v1013
          %v1094 = vunpack.c.l.b16 %v1014
          %v1095 = vunpack.c.l.b16 %v1015
          %v1096 = vunpack.c.l.b16 %v1016
          %v1097 = vunpack.c.l.b16 %v1017
          %v1098 = vunpack.c.l.b16 %v1018
          %v1099 = vunpack.c.l.b16 %v1019
          %v1100 = vunpack.c.l.b16 %v1020
          %v1101 = vunpack.c.l.b16 %v1021
          %v1102 = vunpack.c.l.b16 %v1022
          %v1103 = vunpack.c.l.b16 %v1023
          %v1104 = vunpack.c.l.b16 %v1024
          %v1105 = vpack.c.b16 %v1090, %v1089
          %v1106 = vpack.c.b16 %v1092, %v1091
          %v1107 = vpack.c.b16 %v1094, %v1093
          %v1108 = vpack.c.b16 %v1096, %v1095
          %v1109 = vpack.c.b16 %v1098, %v1097
          %v1110 = vpack.c.b16 %v1100, %v1099
          %v1111 = vpack.c.b16 %v1102, %v1101
          %v1112 = vpack.c.b16 %v1104, %v1103
          %1121 = vmatpush.bf16.xpose.msra.mxu0 %v1112
          %1122 = vmatpush.bf16.xpose.msra.mxu0 %v1111
          %1123 = vmatpush.bf16.xpose.msra.mxu0 %v1110
          %1124 = vmatpush.bf16.xpose.msra.mxu0 %v1109
          %1125 = vmatpush.bf16.xpose.msra.mxu0 %v1108
          %1126 = vmatpush.bf16.xpose.msra.mxu0 %v1107
          %1127 = vmatpush.bf16.xpose.msra.mxu0 %v1106
          %1128 = vmatpush.bf16.xpose.msra.mxu0 %v1105
          %1129 = vmatmul.bf16.gmra.mxu0 %v1057
          %v1130 = vpop.f32.mrf.mxu0
          %v1131 = vadd.f32 0.0, %v1130
          %v1132 = vpop.f32.mrf.mxu0
          %v1133 = vadd.f32 0.0, %v1132
          %1134 = vmatmul.bf16.gmra.mxu0 %v1058
          %v1135 = vpop.f32.mrf.mxu0
          %v1136 = vadd.f32 0.0, %v1135
          %v1137 = vpop.f32.mrf.mxu0
          %v1138 = vadd.f32 0.0, %v1137
          %1139 = vmatmul.bf16.gmra.mxu0 %v1059
          %v1140 = vpop.f32.mrf.mxu0
          %v1141 = vadd.f32 0.0, %v1140
          %v1142 = vpop.f32.mrf.mxu0
          %v1143 = vadd.f32 0.0, %v1142
          %1144 = vmatmul.bf16.gmra.mxu0 %v1060
          %v1145 = vpop.f32.mrf.mxu0
          %v1146 = vadd.f32 0.0, %v1145
          %v1147 = vpop.f32.mrf.mxu0
          %v1148 = vadd.f32 0.0, %v1147
          %1149 = vmatmul.bf16.gmra.mxu0 %v1061
          %v1150 = vpop.f32.mrf.mxu0
          %v1151 = vadd.f32 0.0, %v1150
          %v1152 = vpop.f32.mrf.mxu0
          %v1153 = vadd.f32 0.0, %v1152
          %1154 = vmatmul.bf16.gmra.mxu0 %v1062
          %v1155 = vpop.f32.mrf.mxu0
          %v1156 = vadd.f32 0.0, %v1155
          %v1157 = vpop.f32.mrf.mxu0
          %v1158 = vadd.f32 0.0, %v1157
          %1159 = vmatmul.bf16.gmra.mxu0 %v1063
          %v1160 = vpop.f32.mrf.mxu0
          %v1161 = vadd.f32 0.0, %v1160
          %v1162 = vpop.f32.mrf.mxu0
          %v1163 = vadd.f32 0.0, %v1162
          %1164 = vmatmul.bf16.gmra.mxu0 %v1064
          %v1165 = vpop.f32.mrf.mxu0
          %v1166 = vadd.f32 0.0, %v1165
          %v1167 = vpop.f32.mrf.mxu0
          %v1168 = vadd.f32 0.0, %v1167
          %1169 = vdwg.mxu0
          %v1170 = vlaneseq
          %v1171 = vshrl.u32 %v1170, 7
          %v1172 = vadd.s32 %v1171, 8
          %v1173 = vadd.s32 %v1171, 16
          %v1174 = vadd.s32 %v1171, 24
          %v1175 = vadd.s32 %v1171, 32
          %v1176 = vadd.s32 %v1171, 40
          %v1177 = vadd.s32 %v1171, 48
          %v1178 = vadd.s32 %v1171, 56
          %v1179 = vadd.s32 %v1171, 64
          %v1180 = vadd.s32 %v1171, 72
          %v1181 = vadd.s32 %v1171, 80
          %v1182 = vadd.s32 %v1171, 88
          %v1183 = vadd.s32 %v1171, 96
          %v1184 = vadd.s32 %v1171, 104
          %v1185 = vadd.s32 %v1171, 112
          %v1186 = vadd.s32 %v1171, 120
          %v1187 = vlaneseq
          %v1188 = vand.u32 %v1187, 127
          %v1189 = vsub.s32 %v1188, %v1171
          %v1190 = vsub.s32 %v1188, %v1172
          %v1191 = vsub.s32 %v1188, %v1173
          %v1192 = vsub.s32 %v1188, %v1174
          %v1193 = vsub.s32 %v1188, %v1175
          %v1194 = vsub.s32 %v1188, %v1176
          %v1195 = vsub.s32 %v1188, %v1177
          %v1196 = vsub.s32 %v1188, %v1178
          %v1197 = vsub.s32 %v1188, %v1179
          %v1198 = vsub.s32 %v1188, %v1180
          %v1199 = vsub.s32 %v1188, %v1181
          %v1200 = vsub.s32 %v1188, %v1182
          %v1201 = vsub.s32 %v1188, %v1183
          %v1202 = vsub.s32 %v1188, %v1184
          %v1203 = vsub.s32 %v1188, %v1185
          %v1204 = vsub.s32 %v1188, %v1186
          %vm1205 = vcmp.le.s32.totalorder %v1189, 4294967295
          %vm1206 = vcmp.le.s32.totalorder %v1190, 4294967295
          %vm1207 = vcmp.le.s32.totalorder %v1191, 4294967295
          %vm1208 = vcmp.le.s32.totalorder %v1192, 4294967295
          %vm1209 = vcmp.le.s32.totalorder %v1193, 4294967295
          %vm1210 = vcmp.le.s32.totalorder %v1194, 4294967295
          %vm1211 = vcmp.le.s32.totalorder %v1195, 4294967295
          %vm1212 = vcmp.le.s32.totalorder %v1196, 4294967295
          %vm1213 = vcmp.le.s32.totalorder %v1197, 4294967295
          %vm1214 = vcmp.le.s32.totalorder %v1198, 4294967295
          %vm1215 = vcmp.le.s32.totalorder %v1199, 4294967295
          %vm1216 = vcmp.le.s32.totalorder %v1200, 4294967295
          %vm1217 = vcmp.le.s32.totalorder %v1201, 4294967295
          %vm1218 = vcmp.le.s32.totalorder %v1202, 4294967295
          %vm1219 = vcmp.le.s32.totalorder %v1203, 4294967295
          %vm1220 = vcmp.le.s32.totalorder %v1204, 4294967295
          %v1221 = vsel %vm1205, %v1131, -inf
          %v1222 = vsel %vm1206, %v1133, -inf
          %v1223 = vsel %vm1207, %v1136, -inf
          %v1224 = vsel %vm1208, %v1138, -inf
          %v1225 = vsel %vm1209, %v1141, -inf
          %v1226 = vsel %vm1210, %v1143, -inf
          %v1227 = vsel %vm1211, %v1146, -inf
          %v1228 = vsel %vm1212, %v1148, -inf
          %v1229 = vsel %vm1213, %v1151, -inf
          %v1230 = vsel %vm1214, %v1153, -inf
          %v1231 = vsel %vm1215, %v1156, -inf
          %v1232 = vsel %vm1216, %v1158, -inf
          %v1233 = vsel %vm1217, %v1161, -inf
          %v1234 = vsel %vm1218, %v1163, -inf
          %v1235 = vsel %vm1219, %v1166, -inf
          %v1236 = vsel %vm1220, %v1168, -inf
          %1237 = vst [vmem:[%s307] sm:$0xff] %v1221
          %1238 = vst [vmem:[%s307 + $0x8] sm:$0xff] %v1222
          %1239 = vst [vmem:[%s307 + $0x10] sm:$0xff] %v1223
          %1240 = vst [vmem:[%s307 + $0x18] sm:$0xff] %v1224
          %1241 = vst [vmem:[%s307 + $0x20] sm:$0xff] %v1225
          %1242 = vst [vmem:[%s307 + $0x28] sm:$0xff] %v1226
          %1243 = vst [vmem:[%s307 + $0x30] sm:$0xff] %v1227
          %1244 = vst [vmem:[%s307 + $0x38] sm:$0xff] %v1228
          %1245 = vst [vmem:[%s307 + $0x40] sm:$0xff] %v1229
          %1246 = vst [vmem:[%s307 + $0x48] sm:$0xff] %v1230
          %1247 = vst [vmem:[%s307 + $0x50] sm:$0xff] %v1231
          %1248 = vst [vmem:[%s307 + $0x58] sm:$0xff] %v1232
          %1249 = vst [vmem:[%s307 + $0x60] sm:$0xff] %v1233
          %1250 = vst [vmem:[%s307 + $0x68] sm:$0xff] %v1234
          %1251 = vst [vmem:[%s307 + $0x70] sm:$0xff] %v1235
          %1252 = vst [vmem:[%s307 + $0x78] sm:$0xff] %v1236
        $region60: #{tpu_custom_call.1} parent=39 // pred_fallthru
          _
        %s1253 = sand.u32 %s156, 1
        %s1254 = scalar_lea.sflag [#allocation6], %s1253
        %s1255 = sand.u32 %s156, 1
        %s1256 = smul.addr %s1255, 128
        %s1257 = scalar_lea.vmem [#allocation12], %s1256
        // Predicated region
        $region61: #{tpu_custom_call.1} parent=39 // pred_check
          %p1258 = pneg %p166
        $region62: #{tpu_custom_call.1} parent=39 // pred_check_branch
          %1260 = sbr.rel (%p1258) target = $region64
        $region63: #{tpu_custom_call.1} parent=39 // pred_region
          %1262 = vsyncadd %s1254, 0
          %s1263 = smul.addr %s28, 16
          %s1264 = smul.addr %s1263, 8
          %s1265 = scalar_lea.hbm %s5, %s1264
          %s1266 = sshll.u32 %s1257, 4
          %s1267 = int_to_ptr.vmem [resolvable:$true] %s1266
          %s1268 = sshll.u32 %s1265, 4
          %s1269 = int_to_ptr.hbm [resolvable:$true] %s1268
          %1274 = dma.vmem_to_hbm [thread:$0]  %s1267, 2048, %s1269, %s1254, 128, 128, 8
        $region64: #{tpu_custom_call.1} parent=39 // pred_fallthru
          _
      $region40: #{tpu_custom_call.1} parent=5 // pred_fallthru
        _
      %p1275 = scmp.le.s32.totalorder 2, %s19
      // Predicated region
      $region65: #{tpu_custom_call.1} parent=5 // pred_check
        %p1276 = pneg %p1275
      $region66: #{tpu_custom_call.1} parent=5 // pred_check_branch
        %1278 = sbr.rel (%p1276) target = $region68
      $region67: #{tpu_custom_call.1} parent=5 // pred_region
        %s1279 = ssub.s32 %s19, 2
        // Predicated region
        $region69: #{tpu_custom_call.1} parent=67 // pred_check
          %p1280 = pneg %p172
        $region70: #{tpu_custom_call.1} parent=67 // pred_check_branch
          %1282 = sbr.rel (%p1280) target = $region72
        $region71: #{tpu_custom_call.1} parent=67 // pred_region
          %s1283 = sand.u32 %s157, 1
          %s1284 = scalar_lea.sflag [#allocation6], %s1283
          %s1285 = sand.u32 %s157, 1
          %s1286 = smul.addr %s1285, 128
          %s1287 = scalar_lea.vmem [#allocation12], %s1286
          %1289 = dma.done %s1284, 2048
        $region72: #{tpu_custom_call.1} parent=67 // pred_fallthru
          _
      $region68: #{tpu_custom_call.1} parent=5 // pred_fallthru
        _
    $region6: #{tpu_custom_call.1} parent=1 // loop_footer
      %s23 = sadd.s32 1, %s19
    $region7: #{tpu_custom_call.1} parent=1 // loop_footer_branch
      %18 = sbr.rel target = $region3
    $region8: #{tpu_custom_call.1} parent=1 // loop_exit
      _
    %1290 = vsyncpa [#allocation5], 1
    %s1291 = scalar_lea.sflag [#allocation5], 1
    %1292 = vsyncpa %s1291, 1
    %1293 = vsyncpa [#allocation10], 1
    %1294 = vsyncpa [#allocation6], 1
    %s1295 = scalar_lea.sflag [#allocation6], 1
    %1296 = vsyncpa %s1295, 1
    %1297 = vsyncpa [#allocation7], 1
    %s1298 = scalar_lea.sflag [#allocation7], 1
    %1299 = vsyncpa %s1298, 1

</llo_original>
